<compile_context>
chip_gen: v7x
topology: tpu7x:2x2x1
jax: 0.10.0
libtpu: 0.0.40
codegen_flags: <defaults>
</compile_context>

<pallas_src>
import jax
import jax.numpy as jnp
from jax import lax
from jax.experimental import pallas as pl
from jax.experimental.pallas import tpu as pltpu


def _round_up(x, m):
    return ((x + m - 1) // m) * m


def _new_gelu(x):
    # NewGELUActivation (GPT-style tanh approximation), computed in f32.
    c = jnp.float32(0.7978845608028654)  # sqrt(2/pi)
    x2 = x * x
    return 0.5 * x * (1.0 + jnp.tanh(c * x * (1.0 + 0.044715 * x2)))


def moss_mlp_kernel(x_ref, w1_ref, w2_ref, o_ref, acc_ref):
    # x_ref : (tm, E)   VMEM tile of flattened hidden states
    # w1_ref: (ti, E)   slice of fc_in weight, PyTorch (out, in) layout
    # w2_ref: (E, ti)   slice of fc_out weight, PyTorch (out, in) layout
    # o_ref : (tm, E)   output tile
    # acc_ref: (tm, E)  f32 accumulator scratch (resident across the I axis)
    k = pl.program_id(1)

    @pl.when(k == 0)
    def _init():
        acc_ref[...] = jnp.zeros_like(acc_ref)

    # fc_in chunk: h = x @ w1_chunk.T  (contract over n_embd), f32 accumulation.
    h = lax.dot_general(
        x_ref[...], w1_ref[...],
        dimension_numbers=(((1,), (1,)), ((), ())),
        preferred_element_type=jnp.float32)
    h = _new_gelu(h)

    # fc_out partial: acc += gelu(h) @ w2_chunk.T (contract over the I chunk).
    acc_ref[...] += lax.dot_general(
        h.astype(w2_ref.dtype), w2_ref[...],
        dimension_numbers=(((1,), (1,)), ((), ())),
        preferred_element_type=jnp.float32)

    @pl.when(k == pl.num_programs(1) - 1)
    def _finalize():
        # TODO(synk): nn.Dropout(resid_pdrop) is a training-time op; identity at inference.
        o_ref[...] = acc_ref[...].astype(o_ref.dtype)


def moss_mlp(hidden_states, w_fc_in, w_fc_out, *, tm=256, ti=512):
    """hidden_states: (B, S, n_embd)
       w_fc_in:  (intermediate, n_embd)   -- PyTorch Linear weight layout (out, in)
       w_fc_out: (n_embd, intermediate)   -- PyTorch Linear weight layout (out, in)
    """
    B, S, E = hidden_states.shape
    I, E_in = w_fc_in.shape
    assert E_in == E and w_fc_out.shape == (E, I)

    M = B * S
    x2d = hidden_states.reshape(M, E)

    # Row tile: multiple of 8 sublanes, capped by (padded) M.
    tm = min(tm, _round_up(M, 8))
    M_pad = _round_up(M, tm)
    if M_pad != M:
        x2d = jnp.pad(x2d, ((0, M_pad - M), (0, 0)))

    # Intermediate (reduction) tile: multiple of 128 lanes that divides I,
    # otherwise fall back to the full intermediate dim (small/test shapes).
    if ti >= I or I % ti != 0 or ti % 128 != 0:
        ti = I

    grid = (M_pad // tm, I // ti)

    out2d = pl.pallas_call(
        moss_mlp_kernel,
        out_shape=jax.ShapeDtypeStruct((M_pad, E), hidden_states.dtype),
        grid_spec=pltpu.PrefetchScalarGridSpec(
            num_scalar_prefetch=0,
            grid=grid,
            in_specs=[
                pl.BlockSpec((tm, E), lambda i, k: (i, 0)),   # activations
                pl.BlockSpec((ti, E), lambda i, k: (k, 0)),   # fc_in rows chunk
                pl.BlockSpec((E, ti), lambda i, k: (0, k)),   # fc_out cols chunk
            ],
            out_specs=pl.BlockSpec((tm, E), lambda i, k: (i, 0)),
            scratch_shapes=[pltpu.VMEM((tm, E), jnp.float32)],
        ),
        compiler_params=pltpu.CompilerParams(
            dimension_semantics=("parallel", "arbitrary"),
            vmem_limit_bytes=64 * 1024 * 1024,
        ),
    )(x2d, w_fc_in, w_fc_out)

    if M_pad != M:
        out2d = out2d[:M]
    return out2d.reshape(B, S, E)


def _reference(hidden_states, w_fc_in, w_fc_out):
    x = hidden_states.astype(jnp.float32)
    h = x @ w_fc_in.T.astype(jnp.float32)
    h = _new_gelu(h)
    y = h @ w_fc_out.T.astype(jnp.float32)
    return y.astype(hidden_states.dtype)


if __name__ == "__main__":
    # Small shapes consistent with the module: n_embd=32, intermediate=4*32=128.
    B, S, E = 2, 8, 32
    I = 4 * E

    key = jax.random.PRNGKey(0)
    kx, k1, k2 = jax.random.split(key, 3)
    x = jax.random.normal(kx, (B, S, E), dtype=jnp.float32)
    # Deterministic synthetic weights in PyTorch Linear layout (out, in).
    w_fc_in = jax.random.normal(k1, (I, E), dtype=jnp.float32) * 0.02
    w_fc_out = jax.random.normal(k2, (E, I), dtype=jnp.float32) * 0.02

    out = moss_mlp(x, w_fc_in, w_fc_out)
    out = jax.block_until_ready(out)

    ref = _reference(x, w_fc_in, w_fc_out)
    assert out.shape == (B, S, E)
    assert jnp.allclose(out, ref, atol=1e-5, rtol=1e-5), "mismatch vs reference"

    print("KERNEL_OK")
</pallas_src>

<mosaic_0001>
module attributes {stable_mosaic.version = 11 : i64} {
  func.func @moss_mlp_kernel(%arg0: i32, %arg1: i32, %arg2: memref<16x32xf32, #tpu.memory_space<vmem>>, %arg3: memref<128x32xf32, #tpu.memory_space<vmem>>, %arg4: memref<32x128xf32, #tpu.memory_space<vmem>>, %arg5: memref<16x32xf32, #tpu.memory_space<vmem>>, %arg6: memref<16x32xf32, #tpu.memory_space<vmem>>) attributes {dimension_semantics = [#tpu.dimension_semantics<parallel>, #tpu.dimension_semantics<arbitrary>], iteration_bounds = array<i64: 1, 1>, scalar_prefetch = 0 : i64, scratch_operands = 1 : i64, tpu.core_type = #tpu.core_type<tc>, window_params = [{transform_indices = @transform_0, window_bounds = array<i64: 16, 32>}, {transform_indices = @transform_1, window_bounds = array<i64: 128, 32>}, {transform_indices = @transform_2, window_bounds = array<i64: 32, 128>}, {transform_indices = @transform_3, window_bounds = array<i64: 16, 32>}]} {
    %c0_i32 = arith.constant 0 : i32
    %0 = arith.cmpi eq, %arg1, %c0_i32 : i32
    %1 = arith.extui %0 : i1 to i32
    %c0_i32_0 = arith.constant 0 : i32
    %2 = arith.cmpi ne, %1, %c0_i32_0 : i32
    scf.if %2 {
      %cst_18 = arith.constant 0.000000e+00 : f32
      %28 = vector.broadcast %cst_18 : f32 to vector<16x32xf32>
      %c0_19 = arith.constant 0 : index
      %c0_20 = arith.constant 0 : index
      %29 = vector.load %arg6[%c0_19, %c0_20] : memref<16x32xf32, #tpu.memory_space<vmem>>, vector<16x32xf32>
      tpu.vector_store %arg6[%c0_19, %c0_20], %28 {strides = array<i32>} : memref<16x32xf32, #tpu.memory_space<vmem>>, vector<16x32xf32>,
    } else {
    }
    %c0 = arith.constant 0 : index
    %c0_1 = arith.constant 0 : index
    %3 = vector.load %arg2[%c0, %c0_1] : memref<16x32xf32, #tpu.memory_space<vmem>>, vector<16x32xf32>
    %c0_2 = arith.constant 0 : index
    %c0_3 = arith.constant 0 : index
    %4 = vector.load %arg3[%c0_2, %c0_3] : memref<128x32xf32, #tpu.memory_space<vmem>>, vector<128x32xf32>
    %cst = arith.constant dense<0.000000e+00> : vector<16x128xf32>
    %5 = tpu.matmul %3, %4, %cst {dimension_numbers = #tpu.dot_dimension_numbers<[1], [1], [0], [0], [0, 0, 1, 0], [], []>} : vector<16x32xf32>, vector<128x32xf32>, vector<16x128xf32> -> vector<16x128xf32>
    %6 = arith.mulf %5, %5 : vector<16x128xf32>
    %cst_4 = arith.constant 5.000000e-01 : f32
    %7 = vector.broadcast %cst_4 : f32 to vector<16x128xf32>
    %8 = arith.mulf %7, %5 : vector<16x128xf32>
    %cst_5 = arith.constant 0.797884583 : f32
    %9 = vector.broadcast %cst_5 : f32 to vector<16x128xf32>
    %10 = arith.mulf %9, %5 : vector<16x128xf32>
    %cst_6 = arith.constant 4.471500e-02 : f32
    %11 = vector.broadcast %cst_6 : f32 to vector<16x128xf32>
    %12 = arith.mulf %11, %6 : vector<16x128xf32>
    %cst_7 = arith.constant 1.000000e+00 : f32
    %13 = vector.broadcast %cst_7 : f32 to vector<16x128xf32>
    %14 = arith.addf %13, %12 : vector<16x128xf32>
    %15 = arith.mulf %10, %14 : vector<16x128xf32>
    %16 = math.tanh %15 : vector<16x128xf32>
    %cst_8 = arith.constant 1.000000e+00 : f32
    %17 = vector.broadcast %cst_8 : f32 to vector<16x128xf32>
    %18 = arith.addf %17, %16 : vector<16x128xf32>
    %19 = arith.mulf %8, %18 : vector<16x128xf32>
    %c0_9 = arith.constant 0 : index
    %c0_10 = arith.constant 0 : index
    %20 = vector.load %arg6[%c0_9, %c0_10] : memref<16x32xf32, #tpu.memory_space<vmem>>, vector<16x32xf32>
    %c0_11 = arith.constant 0 : index
    %c0_12 = arith.constant 0 : index
    %21 = vector.load %arg4[%c0_11, %c0_12] : memref<32x128xf32, #tpu.memory_space<vmem>>, vector<32x128xf32>
    %cst_13 = arith.constant dense<0.000000e+00> : vector<16x32xf32>
    %22 = tpu.matmul %19, %21, %cst_13 {dimension_numbers = #tpu.dot_dimension_numbers<[1], [1], [0], [0], [0, 0, 1, 0], [], []>} : vector<16x128xf32>, vector<32x128xf32>, vector<16x32xf32> -> vector<16x32xf32>
    %23 = arith.addf %20, %22 : vector<16x32xf32>
    %c0_14 = arith.constant 0 : index
    %c0_15 = arith.constant 0 : index
    %24 = vector.load %arg6[%c0_14, %c0_15] : memref<16x32xf32, #tpu.memory_space<vmem>>, vector<16x32xf32>
    tpu.vector_store %arg6[%c0_14, %c0_15], %23 {strides = array<i32>} : memref<16x32xf32, #tpu.memory_space<vmem>>, vector<16x32xf32>,
    %c0_i32_16 = arith.constant 0 : i32
    %25 = arith.cmpi eq, %arg1, %c0_i32_16 : i32
    %26 = arith.extui %25 : i1 to i32
    %c0_i32_17 = arith.constant 0 : i32
    %27 = arith.cmpi ne, %26, %c0_i32_17 : i32
    scf.if %27 {
      %c0_18 = arith.constant 0 : index
      %c0_19 = arith.constant 0 : index
      %28 = vector.load %arg6[%c0_18, %c0_19] : memref<16x32xf32, #tpu.memory_space<vmem>>, vector<16x32xf32>
      %c0_20 = arith.constant 0 : index
      %c0_21 = arith.constant 0 : index
      %29 = vector.load %arg5[%c0_20, %c0_21] : memref<16x32xf32, #tpu.memory_space<vmem>>, vector<16x32xf32>
      tpu.vector_store %arg5[%c0_20, %c0_21], %28 {strides = array<i32>} : memref<16x32xf32, #tpu.memory_space<vmem>>, vector<16x32xf32>,
    } else {
    }
    return
  }
  func.func @transform_0(%arg0: i32, %arg1: i32) -> (i32, i32) {
    %c0_i32 = arith.constant 0 : i32
    %c0_i32_0 = arith.constant 0 : i32
    return %arg0, %c0_i32 : i32, i32
  }
  func.func @transform_1(%arg0: i32, %arg1: i32) -> (i32, i32) {
    %c0_i32 = arith.constant 0 : i32
    %c0_i32_0 = arith.constant 0 : i32
    return %arg1, %c0_i32 : i32, i32
  }
  func.func @transform_2(%arg0: i32, %arg1: i32) -> (i32, i32) {
    %c0_i32 = arith.constant 0 : i32
    %c0_i32_0 = arith.constant 0 : i32
    return %c0_i32, %arg1 : i32, i32
  }
  func.func @transform_3(%arg0: i32, %arg1: i32) -> (i32, i32) {
    %c0_i32 = arith.constant 0 : i32
    %c0_i32_0 = arith.constant 0 : i32
    return %arg0, %c0_i32 : i32, i32
  }
}

</mosaic_0001>

<llo_original>
// kernel: tpu_custom_call.1
$region0: #{tpu_custom_call.1}
  #allocation0 [shape = 'u32[]', space=smem, size = 0x4, offset = 0x4, fixed_abs, tag = 'smem constant byte address 0x4 - core index']
  #allocation1 [shape = 'u32[144,128]{1,0:T(1,128)}', space=vmem, size = 0x12000, scoped, tag = 'internal scratch']
  #allocation2 [shape = 'f32[16,32]{1,0:T(8,128)}', space=vmem, size = 0x2000, scoped, tag = 'scratch operand']
  %s0 = inlined_call_operand.hbm [shape: f32[16,32], index: 0, kind: input, shape index: {}]
  %s1 = inlined_call_operand.hbm [shape: f32[128,32], index: 1, kind: input, shape index: {}]
  %s2 = inlined_call_operand.hbm [shape: f32[32,128], index: 2, kind: input, shape index: {}]
  %s3 = inlined_call_operand.hbm [shape: f32[16,32], index: 3, kind: output, shape index: {}]
  %s4 = sld [smem:[#allocation0]]
  $region42: #{tpu_custom_call.1} parent=0
    _
  %s6 = ssub.s32 1, %s4
  %s7 = scalar_select 0, %s6, %s4
  $region1: #{tpu_custom_call.1} parent=0
    #allocation3 [shape = 'u8[8192]{0}', space=vmem, size = 0x2000, scoped, tag = 'input window, operand 0, single buffered']
    #allocation4 [shape = 's32[1]{0}', space=sflag, size = 0x4, scoped, tag = 'scoped memory for tpu_custom_call.1']
    #allocation5 [shape = 's32[1]{0}', space=sflag, size = 0x4, scoped, tag = 'scoped memory for tpu_custom_call.1']
    #allocation6 [shape = 'u8[65536]{0}', space=vmem, size = 0x10000, scoped, tag = 'input window, operand 1, single buffered']
    #allocation7 [shape = 's32[1]{0}', space=sflag, size = 0x4, scoped, tag = 'scoped memory for tpu_custom_call.1']
    #allocation8 [shape = 'u8[16384]{0}', space=vmem, size = 0x4000, scoped, tag = 'input window, operand 2, single buffered']
    #allocation9 [shape = 'u8[8192]{0}', space=vmem, size = 0x2000, scoped, tag = 'output window, operand 0, single buffered']
    %8 = vsyncpa [#allocation4], 0
    %9 = vsyncpa [#allocation7], 0
    %10 = vsyncpa [#allocation5], 0
    // Predicated region
    $region2: #{tpu_custom_call.1} parent=1 // pred_check
      _
    $region3: #{tpu_custom_call.1} parent=1 // pred_check_branch
      %12 = sbr.rel (0) target = $region5
    $region4: #{tpu_custom_call.1} parent=1 // pred_region
      %s14 = ssub.s32 256, 256
      %15 = vsyncadd [#allocation4], %s14
      %s16 = sshll.u32 [#allocation3], 4
      %s17 = int_to_ptr.vmem [resolvable:$true] %s16
      %22 = dma.hbm_to_vmem [thread:$0]  %s0, 256, %s17, [#allocation4], 128, 128, 8
    $region5: #{tpu_custom_call.1} parent=1 // pred_fallthru
      _
    // Predicated region
    $region6: #{tpu_custom_call.1} parent=1 // pred_check
      _
    $region7: #{tpu_custom_call.1} parent=1 // pred_check_branch
      %24 = sbr.rel (0) target = $region9
    $region8: #{tpu_custom_call.1} parent=1 // pred_region
      %s26 = ssub.s32 2048, 2048
      %27 = vsyncadd [#allocation7], %s26
      %s28 = sshll.u32 [#allocation6], 4
      %s29 = int_to_ptr.vmem [resolvable:$true] %s28
      %34 = dma.hbm_to_vmem [thread:$0]  %s1, 2048, %s29, [#allocation7], 128, 128, 8
    $region9: #{tpu_custom_call.1} parent=1 // pred_fallthru
      _
    // Predicated region
    $region10: #{tpu_custom_call.1} parent=1 // pred_check
      _
    $region11: #{tpu_custom_call.1} parent=1 // pred_check_branch
      %36 = sbr.rel (0) target = $region13
    $region12: #{tpu_custom_call.1} parent=1 // pred_region
      %s38 = ssub.s32 512, 512
      %39 = vsyncadd [#allocation7], %s38
      %s40 = sshll.u32 [#allocation8], 4
      %s41 = int_to_ptr.vmem [resolvable:$true] %s40
      %46 = dma.hbm_to_vmem [thread:$0]  %s2, 512, %s41, [#allocation7], 128, 128, 8
    $region13: #{tpu_custom_call.1} parent=1 // pred_fallthru
      _
    // Predicated region
    $region14: #{tpu_custom_call.1} parent=1 // pred_check
      _
    $region15: #{tpu_custom_call.1} parent=1 // pred_check_branch
      %48 = sbr.rel (0) target = $region17
    $region16: #{tpu_custom_call.1} parent=1 // pred_region
      %49 = dma.done [#allocation4], 256
    $region17: #{tpu_custom_call.1} parent=1 // pred_fallthru
      _
    // Predicated region
    $region18: #{tpu_custom_call.1} parent=1 // pred_check
      _
    $region19: #{tpu_custom_call.1} parent=1 // pred_check_branch
      %51 = sbr.rel (0) target = $region21
    $region20: #{tpu_custom_call.1} parent=1 // pred_region
      %52 = dma.done [#allocation7], 2048
    $region21: #{tpu_custom_call.1} parent=1 // pred_fallthru
      _
    // Predicated region
    $region22: #{tpu_custom_call.1} parent=1 // pred_check
      _
    $region23: #{tpu_custom_call.1} parent=1 // pred_check_branch
      %54 = sbr.rel (0) target = $region25
    $region24: #{tpu_custom_call.1} parent=1 // pred_region
      %55 = dma.done [#allocation7], 512
    $region25: #{tpu_custom_call.1} parent=1 // pred_fallthru
      _
    %p56 = scmp.eq.s32.totalorder 0, 0
    // Predicated region
    $region26: #{tpu_custom_call.1} parent=1 // pred_check
      %p57 = pneg %p56
    $region27: #{tpu_custom_call.1} parent=1 // pred_check_branch
      %59 = sbr.rel (%p57) target = $region29
    $region28: #{tpu_custom_call.1} parent=1 // pred_region
      %vm60 = vcmask 261120
      %61 = vst.msk [vmem:[#allocation2] sm:$0xff] %vm60, 0.0
      %62 = vst.msk [vmem:[#allocation2 + $0x8] sm:$0xff] %vm60, 0.0
    $region29: #{tpu_custom_call.1} parent=1 // pred_fallthru
      _
    %v63 = vld [vmem:[#allocation3] sm:$0xff]
    %v64 = vld [vmem:[#allocation3 + $0x8] sm:$0xff]
    %v65 = vld [vmem:[#allocation6] sm:$0xff]
    %v66 = vld [vmem:[#allocation6 + $0x8] sm:$0xff]
    %v67 = vld [vmem:[#allocation6 + $0x10] sm:$0xff]
    %v68 = vld [vmem:[#allocation6 + $0x18] sm:$0xff]
    %v69 = vld [vmem:[#allocation6 + $0x20] sm:$0xff]
    %v70 = vld [vmem:[#allocation6 + $0x28] sm:$0xff]
    %v71 = vld [vmem:[#allocation6 + $0x30] sm:$0xff]
    %v72 = vld [vmem:[#allocation6 + $0x38] sm:$0xff]
    %v73 = vld [vmem:[#allocation6 + $0x40] sm:$0xff]
    %v74 = vld [vmem:[#allocation6 + $0x48] sm:$0xff]
    %v75 = vld [vmem:[#allocation6 + $0x50] sm:$0xff]
    %v76 = vld [vmem:[#allocation6 + $0x58] sm:$0xff]
    %v77 = vld [vmem:[#allocation6 + $0x60] sm:$0xff]
    %v78 = vld [vmem:[#allocation6 + $0x68] sm:$0xff]
    %v79 = vld [vmem:[#allocation6 + $0x70] sm:$0xff]
    %v80 = vld [vmem:[#allocation6 + $0x78] sm:$0xff]
    %vm81 = vcmask 261120
    %v83 = vsel %vm81, %v63, 0
    %v86 = vsel %vm81, %v64, 0
    %v89 = vsel %vm81, %v65, 0
    %v92 = vsel %vm81, %v66, 0
    %v95 = vsel %vm81, %v67, 0
    %v98 = vsel %vm81, %v68, 0
    %v101 = vsel %vm81, %v69, 0
    %v104 = vsel %vm81, %v70, 0
    %v107 = vsel %vm81, %v71, 0
    %v110 = vsel %vm81, %v72, 0
    %v113 = vsel %vm81, %v73, 0
    %v116 = vsel %vm81, %v74, 0
    %v119 = vsel %vm81, %v75, 0
    %v122 = vsel %vm81, %v76, 0
    %v125 = vsel %vm81, %v77, 0
    %v128 = vsel %vm81, %v78, 0
    %v131 = vsel %vm81, %v79, 0
    %v134 = vsel %vm81, %v80, 0
    %136 = vmatprep.subr.mxu0 0.0
    %137 = vmatpush1.xpose.msra.mxu0 %v89
    %138 = vmatprep.subr.mxu0 0.0
    %139 = vmatpush1.xpose.msra.mxu0 %v92
    %140 = vmatprep.subr.mxu0 0.0
    %141 = vmatpush1.xpose.msra.mxu0 %v95
    %142 = vmatprep.subr.mxu0 0.0
    %143 = vmatpush1.xpose.msra.mxu0 %v98
    %144 = vmatprep.subr.mxu0 0.0
    %145 = vmatpush1.xpose.msra.mxu0 %v101
    %146 = vmatprep.subr.mxu0 0.0
    %147 = vmatpush1.xpose.msra.mxu0 %v104
    %148 = vmatprep.subr.mxu0 0.0
    %149 = vmatpush1.xpose.msra.mxu0 %v107
    %150 = vmatprep.subr.mxu0 0.0
    %151 = vmatpush1.xpose.msra.mxu0 %v110
    %152 = vmatprep.subr.mxu0 0.0
    %153 = vmatpush1.xpose.msra.mxu0 %v113
    %154 = vmatprep.subr.mxu0 0.0
    %155 = vmatpush1.xpose.msra.mxu0 %v116
    %156 = vmatprep.subr.mxu0 0.0
    %157 = vmatpush1.xpose.msra.mxu0 %v119
    %158 = vmatprep.subr.mxu0 0.0
    %159 = vmatpush1.xpose.msra.mxu0 %v122
    %160 = vmatprep.subr.mxu0 0.0
    %161 = vmatpush1.xpose.msra.mxu0 %v125
    %162 = vmatprep.subr.mxu0 0.0
    %163 = vmatpush1.xpose.msra.mxu0 %v128
    %164 = vmatprep.subr.mxu0 0.0
    %165 = vmatpush1.xpose.msra.mxu0 %v131
    %166 = vmatprep.subr.mxu0 0.0
    %167 = vmatpush1.xpose.msra.mxu0 %v134
    %168 = vmatprep.subr.mxu0 0.0
    %169 = vmatpush1.xpose.msra.mxu0 0.0
    %170 = vmatprep.subr.mxu0 0.0
    %171 = vmatpush1.xpose.msra.mxu0 0.0
    %172 = vmatprep.subr.mxu0 0.0
    %173 = vmatpush1.xpose.msra.mxu0 0.0
    %174 = vmatprep.subr.mxu0 0.0
    %175 = vmatpush1.xpose.msra.mxu0 0.0
    %176 = vmatprep.subr.mxu0 0.0
    %177 = vmatpush1.xpose.msra.mxu0 0.0
    %178 = vmatprep.subr.mxu0 0.0
    %179 = vmatpush1.xpose.msra.mxu0 0.0
    %180 = vmatprep.subr.mxu0 0.0
    %181 = vmatpush1.xpose.msra.mxu0 0.0
    %182 = vmatprep.subr.mxu0 0.0
    %183 = vmatpush1.xpose.msra.mxu0 0.0
    %184 = vmatprep.subr.mxu0 0.0
    %185 = vmatpush1.xpose.msra.mxu0 0.0
    %186 = vmatprep.subr.mxu0 0.0
    %187 = vmatpush1.xpose.msra.mxu0 0.0
    %188 = vmatprep.subr.mxu0 0.0
    %189 = vmatpush1.xpose.msra.mxu0 0.0
    %190 = vmatprep.subr.mxu0 0.0
    %191 = vmatpush1.xpose.msra.mxu0 0.0
    %192 = vmatprep.subr.mxu0 0.0
    %193 = vmatpush1.xpose.msra.mxu0 0.0
    %194 = vmatprep.subr.mxu0 0.0
    %195 = vmatpush1.xpose.msra.mxu0 0.0
    %196 = vmatprep.subr.mxu0 0.0
    %197 = vmatpush1.xpose.msra.mxu0 0.0
    %198 = vmatprep.subr.mxu0 0.0
    %199 = vmatpush1.xpose.msra.mxu0 0.0
    %200 = vmatprep.mubr.f32.mxu0 0.0
    %201 = vmatmul.mubr.f32.gmra.mrb[0].mxu0 %v83
    %v202 = vpop.f32.mrb[0].mxu0
    %v203 = vadd.f32 0.0, %v202
    %v204 = vpop.f32.mrb[0].mxu0
    %205 = vmatprep.mubr.f32.mxu0 0.0
    %206 = vmatmul.mubr.f32.gmra.mrb[0].mxu0 %v86
    %v207 = vpop.f32.mrb[0].mxu0
    %v208 = vadd.f32 0.0, %v207
    %v209 = vpop.f32.mrb[0].mxu0
    %210 = vdwg.mxu0
    %v211 = vmul.f32 %v203, %v203
    %v212 = vmul.f32 %v208, %v208
    %v213 = vmul.f32 %v203, 0.5
    %v214 = vmul.f32 %v208, 0.5
    %v215 = vmul.f32 %v203, 0.7978846
    %v216 = vmul.f32 %v208, 0.7978846
    %v217 = vmul.f32 %v211, 0.044715
    %v218 = vmul.f32 %v212, 0.044715
    %v219 = vadd.f32 %v217, 1.0
    %v220 = vadd.f32 %v218, 1.0
    %v221 = vmul.f32 %v215, %v219
    %v222 = vmul.f32 %v216, %v220
    %v223 = vtanh.pop %v221
    %v224 = vtanh.pop %v222
    %v225 = vadd.f32 %v223, 1.0
    %v226 = vadd.f32 %v224, 1.0
    %v227 = vmul.f32 %v213, %v225
    %v228 = vmul.f32 %v214, %v226
    %v229 = vld [vmem:[#allocation2] sm:$0xff]
    %v230 = vld [vmem:[#allocation2 + $0x8] sm:$0xff]
    %v231 = vld [vmem:[#allocation8] sm:$0xff]
    %v232 = vld [vmem:[#allocation8 + $0x8] sm:$0xff]
    %v233 = vld [vmem:[#allocation8 + $0x10] sm:$0xff]
    %v234 = vld [vmem:[#allocation8 + $0x18] sm:$0xff]
    %235 = vmatprep.subr.mxu0 0.0
    %236 = vmatpush1.xpose.msra.mxu0 %v231
    %237 = vmatprep.subr.mxu0 0.0
    %238 = vmatpush1.xpose.msra.mxu0 %v232
    %239 = vmatprep.subr.mxu0 0.0
    %240 = vmatpush1.xpose.msra.mxu0 %v233
    %241 = vmatprep.subr.mxu0 0.0
    %242 = vmatpush1.xpose.msra.mxu0 %v234
    %243 = vmatprep.subr.mxu0 0.0
    %244 = vmatpush1.xpose.msra.mxu0 0.0
    %245 = vmatprep.subr.mxu0 0.0
    %246 = vmatpush1.xpose.msra.mxu0 0.0
    %247 = vmatprep.subr.mxu0 0.0
    %248 = vmatpush1.xpose.msra.mxu0 0.0
    %249 = vmatprep.subr.mxu0 0.0
    %250 = vmatpush1.xpose.msra.mxu0 0.0
    %251 = vmatprep.subr.mxu0 0.0
    %252 = vmatpush1.xpose.msra.mxu0 0.0
    %253 = vmatprep.subr.mxu0 0.0
    %254 = vmatpush1.xpose.msra.mxu0 0.0
    %255 = vmatprep.subr.mxu0 0.0
    %256 = vmatpush1.xpose.msra.mxu0 0.0
    %257 = vmatprep.subr.mxu0 0.0
    %258 = vmatpush1.xpose.msra.mxu0 0.0
    %259 = vmatprep.subr.mxu0 0.0
    %260 = vmatpush1.xpose.msra.mxu0 0.0
    %261 = vmatprep.subr.mxu0 0.0
    %262 = vmatpush1.xpose.msra.mxu0 0.0
    %263 = vmatprep.subr.mxu0 0.0
    %264 = vmatpush1.xpose.msra.mxu0 0.0
    %265 = vmatprep.subr.mxu0 0.0
    %266 = vmatpush1.xpose.msra.mxu0 0.0
    %267 = vmatprep.subr.mxu0 0.0
    %268 = vmatpush1.xpose.msra.mxu0 0.0
    %269 = vmatprep.subr.mxu0 0.0
    %270 = vmatpush1.xpose.msra.mxu0 0.0
    %271 = vmatprep.subr.mxu0 0.0
    %272 = vmatpush1.xpose.msra.mxu0 0.0
    %273 = vmatprep.subr.mxu0 0.0
    %274 = vmatpush1.xpose.msra.mxu0 0.0
    %275 = vmatprep.subr.mxu0 0.0
    %276 = vmatpush1.xpose.msra.mxu0 0.0
    %277 = vmatprep.subr.mxu0 0.0
    %278 = vmatpush1.xpose.msra.mxu0 0.0
    %279 = vmatprep.subr.mxu0 0.0
    %280 = vmatpush1.xpose.msra.mxu0 0.0
    %281 = vmatprep.subr.mxu0 0.0
    %282 = vmatpush1.xpose.msra.mxu0 0.0
    %283 = vmatprep.subr.mxu0 0.0
    %284 = vmatpush1.xpose.msra.mxu0 0.0
    %285 = vmatprep.subr.mxu0 0.0
    %286 = vmatpush1.xpose.msra.mxu0 0.0
    %287 = vmatprep.subr.mxu0 0.0
    %288 = vmatpush1.xpose.msra.mxu0 0.0
    %289 = vmatprep.subr.mxu0 0.0
    %290 = vmatpush1.xpose.msra.mxu0 0.0
    %291 = vmatprep.subr.mxu0 0.0
    %292 = vmatpush1.xpose.msra.mxu0 0.0
    %293 = vmatprep.subr.mxu0 0.0
    %294 = vmatpush1.xpose.msra.mxu0 0.0
    %295 = vmatprep.subr.mxu0 0.0
    %296 = vmatpush1.xpose.msra.mxu0 0.0
    %297 = vmatprep.subr.mxu0 0.0
    %298 = vmatpush1.xpose.msra.mxu0 0.0
    %299 = vmatprep.mubr.f32.mxu0 0.0
    %300 = vmatmul.mubr.f32.gmra.mrb[0].mxu0 %v227
    %v301 = vpop.f32.mrb[0].mxu0
    %v302 = vadd.f32 0.0, %v301
    %v303 = vpop.f32.mrb[0].mxu0
    %304 = vmatprep.mubr.f32.mxu0 0.0
    %305 = vmatmul.mubr.f32.gmra.mrb[0].mxu0 %v228
    %v306 = vpop.f32.mrb[0].mxu0
    %v307 = vadd.f32 0.0, %v306
    %v308 = vpop.f32.mrb[0].mxu0
    %309 = vdwg.mxu0
    %v310 = vadd.f32 %v229, %v302
    %v311 = vadd.f32 %v230, %v307
    %312 = vst.msk [vmem:[#allocation2] sm:$0xff] %vm81, %v310
    %313 = vst.msk [vmem:[#allocation2 + $0x8] sm:$0xff] %vm81, %v311
    // Predicated region
    $region30: #{tpu_custom_call.1} parent=1 // pred_check
      %p314 = pneg %p56
    $region31: #{tpu_custom_call.1} parent=1 // pred_check_branch
      %316 = sbr.rel (%p314) target = $region33
    $region32: #{tpu_custom_call.1} parent=1 // pred_region
      %v317 = vld [vmem:[#allocation2] sm:$0xff]
      %v318 = vld [vmem:[#allocation2 + $0x8] sm:$0xff]
      %319 = vst.msk [vmem:[#allocation9] sm:$0xff] %vm81, %v317
      %320 = vst.msk [vmem:[#allocation9 + $0x8] sm:$0xff] %vm81, %v318
    $region33: #{tpu_custom_call.1} parent=1 // pred_fallthru
      _
    // Predicated region
    $region34: #{tpu_custom_call.1} parent=1 // pred_check
      _
    $region35: #{tpu_custom_call.1} parent=1 // pred_check_branch
      %322 = sbr.rel (0) target = $region37
    $region36: #{tpu_custom_call.1} parent=1 // pred_region
      %s324 = ssub.s32 256, 256
      %325 = vsyncadd [#allocation5], %s324
      %s326 = sshll.u32 [#allocation9], 4
      %s327 = int_to_ptr.vmem [resolvable:$true] %s326
      %332 = dma.vmem_to_hbm [thread:$0]  %s327, 256, %s3, [#allocation5], 128, 128, 8
    $region37: #{tpu_custom_call.1} parent=1 // pred_fallthru
      _
    // Predicated region
    $region38: #{tpu_custom_call.1} parent=1 // pred_check
      _
    $region39: #{tpu_custom_call.1} parent=1 // pred_check_branch
      %334 = sbr.rel (0) target = $region41
    $region40: #{tpu_custom_call.1} parent=1 // pred_region
      %335 = dma.done [#allocation5], 256
    $region41: #{tpu_custom_call.1} parent=1 // pred_fallthru
      _
    %336 = vsyncpa [#allocation4], 1
    %337 = vsyncpa [#allocation7], 1
    %338 = vsyncpa [#allocation5], 1

</llo_original>
